<compile_context>
chip_gen: v7x
topology: tpu7x:2x2x1
jax: 0.10.0
libtpu: 0.0.40
codegen_flags: <defaults>
</compile_context>

<pallas_src>
from typing import NamedTuple

import jax
import jax.numpy as jnp
from jax.experimental import pallas as pl
from jax.experimental.pallas import tpu as pltpu


def _round_up(x, m):
    return ((x + m - 1) // m) * m


def _padded_tile_bytes(rows, cols, itemsize):
    """VMEM footprint of one (rows, cols) tile incl. (sublane, lane) padding."""
    sub = {4: 8, 2: 16, 1: 32}.get(itemsize, 8)
    return _round_up(rows, sub) * _round_up(cols, 128) * itemsize


def _vmem_budget_bytes():
    """Per-generation VMEM budget with headroom for Mosaic internal scratch."""
    try:
        cap = int(pltpu.get_tpu_info().vmem_capacity_bytes)
    except Exception:
        cap = 64 * 1024 * 1024            # conservative: v7x per-TensorCore VMEM
    headroom = max(8 * 1024 * 1024, cap // 8)
    return cap - headroom                 # 64 MiB -> 56 MiB, 128 MiB -> 112 MiB


def _choose_tiles(Bp, M, N, N2p, itm, budget, max_tn=2048):
    """Largest sublane-aligned batch tile / lane-dense column tile that fit VMEM."""
    tn_cands = [d for d in range(min(N2p, max_tn), 127, -128) if N2p % d == 0]
    tb_cands = [d for d in range(Bp, 7, -8) if Bp % d == 0]

    def step_bytes(tb, tn):
        # Pallas double-buffers every block (even constant-index 'resident' ones).
        return 2 * (_padded_tile_bytes(tb, M, itm)      # Z batch tile
                    + _padded_tile_bytes(M, N, itm)     # W1
                    + _padded_tile_bytes(1, N, 4)       # b1
                    + _padded_tile_bytes(N, tn, itm)    # W2 column tile (dominant)
                    + _padded_tile_bytes(1, tn, 4)      # b2 column tile
                    + _padded_tile_bytes(tb, tn, 4))    # output tile (f32)

    for tb in tb_cands:              # prefer the whole batch in one tile
        for tn in tn_cands:          # then the fattest lane-dense column tile
            if step_bytes(tb, tn) <= budget:
                return tb, tn
    return tb_cands[-1], tn_cands[-1]


class DecoderParams(NamedTuple):
    W1: jax.Array    # (M, N)   compute dtype
    b1: jax.Array    # (1, N)   f32
    W2: jax.Array    # (N, N2p) compute dtype, N*N zero-padded to multiple of 128
    b2: jax.Array    # (1, N2p) f32, zero-padded
    num_nodes: int
    n2: int          # unpadded N*N


def prepare_decoder_params(W1, b1, W2, b2, num_nodes, *, compute_dtype=jnp.bfloat16):
    """One-time weight prep OUTSIDE the hot path (cast + pad of the big W2)."""
    N = num_nodes
    N2 = N * N
    N2p = _round_up(N2, 128)
    cdt = jnp.dtype(compute_dtype)
    W1c = jnp.asarray(W1, cdt).reshape(-1, N)
    b1r = jnp.asarray(b1, jnp.float32).reshape(1, N)
    W2c = jnp.asarray(W2, cdt).reshape(N, N2)
    b2r = jnp.asarray(b2, jnp.float32).reshape(1, N2)
    if N2p != N2:
        W2c = jnp.pad(W2c, ((0, 0), (0, N2p - N2)))
        b2r = jnp.pad(b2r, ((0, 0), (0, N2p - N2)))
    return DecoderParams(W1c, b1r, W2c, b2r, N, N2)


def decoder_kernel(z_ref, w1_ref, b1_ref, w2_ref, b2_ref, o_ref):
    # Layer 1: tiny (tb, M) @ (M, N) -> recomputed per step so there is no scratch
    # dependency and every grid axis is independent ("parallel", "parallel").
    h = jnp.dot(z_ref[...], w1_ref[...], preferred_element_type=jnp.float32)
    h = jnp.maximum(h + b1_ref[...], 0.0)                 # f32 bias + ReLU on VPU
    # Layer 2 column tile: (tb, N) @ (N, tn) on the MXU, f32 accumulation,
    # f32 bias epilogue, lane-dense store.
    out = jnp.dot(h.astype(w2_ref.dtype), w2_ref[...],
                  preferred_element_type=jnp.float32)
    o_ref[...] = (out + b2_ref[...]).astype(o_ref.dtype)


def decoder_forward(Z, params: DecoderParams):
    """Z: (B, M) -> (B, num_nodes, num_nodes) float32 (matches torch forward)."""
    N, N2 = params.num_nodes, params.n2
    W1c, b1r, W2c, b2r = params.W1, params.b1, params.W2, params.b2
    M = W1c.shape[0]
    N2p = W2c.shape[1]
    cdt = W2c.dtype
    itm = jnp.dtype(cdt).itemsize

    # Per-call padding only touches the tiny Z operand.
    B = Z.shape[0]
    Bp = _round_up(B, 8)
    Zc = Z.astype(cdt)
    if Bp != B:
        Zc = jnp.pad(Zc, ((0, Bp - B), (0, 0)))

    budget = _vmem_budget_bytes()
    tb, tn = _choose_tiles(Bp, M, N, N2p, itm, budget)
    n_col, n_bat = N2p // tn, Bp // tb
    # Column tiles OUTER, batch tiles INNER: the W2/b2 block index only depends on
    # the outer axis, so each W2 column tile is DMA'd exactly once.
    grid = (n_col, n_bat)

    cost = pl.CostEstimate(
        flops=2 * Bp * M * N * n_col + 2 * Bp * N * N2p,
        transcendentals=0,
        bytes_accessed=(n_col * Bp * M * itm                  # Z re-read per col tile
                        + W1c.size * itm + W2c.size * itm     # W1, W2 read once
                        + b1r.size * 4 + b2r.size * 4
                        + Bp * N2p * 4),                      # output write
    )

    out_flat = pl.pallas_call(
        decoder_kernel,
        out_shape=jax.ShapeDtypeStruct((Bp, N2p), jnp.float32),
        grid_spec=pltpu.PrefetchScalarGridSpec(
            num_scalar_prefetch=0,
            grid=grid,
            in_specs=[
                pl.BlockSpec((tb, M), lambda j, i: (i, 0)),    # Z batch tile (tiny)
                pl.BlockSpec((M, N), lambda j, i: (0, 0)),     # W1 (resident)
                pl.BlockSpec((1, N), lambda j, i: (0, 0)),     # b1 (resident)
                pl.BlockSpec((N, tn), lambda j, i: (0, j)),    # W2 column tile
                pl.BlockSpec((1, tn), lambda j, i: (0, j)),    # b2 column tile
            ],
            out_specs=pl.BlockSpec((tb, tn), lambda j, i: (i, j)),
        ),
        compiler_params=pltpu.CompilerParams(
            dimension_semantics=("parallel", "parallel"),
            vmem_limit_bytes=int(budget),
        ),
        cost_estimate=cost,
    )(Zc, W1c, b1r, W2c, b2r)

    return out_flat[:B, :N2].reshape(B, N, N)


def init_params(key, num_nodes, M):
    """Deterministic init mirroring torch.nn.Linear (uniform +-1/sqrt(fan_in))."""
    N = num_nodes
    k1, k2, k3, k4 = jax.random.split(key, 4)
    lim1 = 1.0 / jnp.sqrt(jnp.float32(M))
    lim2 = 1.0 / jnp.sqrt(jnp.float32(N))
    W1 = jax.random.uniform(k1, (M, N), jnp.float32, -lim1, lim1)       # (in, out)
    b1 = jax.random.uniform(k2, (N,), jnp.float32, -lim1, lim1)
    W2 = jax.random.uniform(k3, (N, N * N), jnp.float32, -lim2, lim2)   # (in, out)
    b2 = jax.random.uniform(k4, (N * N,), jnp.float32, -lim2, lim2)
    return W1, b1, W2, b2


def reference_forward(Z, W1, b1, W2, b2, num_nodes):
    """Plain-JAX reference of the PyTorch forward."""
    h = jnp.maximum(Z @ W1 + b1, 0.0)
    X = h @ W2 + b2
    return X.reshape(-1, num_nodes, num_nodes)


if __name__ == "__main__":
    root_key = jax.random.PRNGKey(0)

    def run_case(batch, num_nodes, M, compute_dtype, atol, rtol):
        case_key = jax.random.fold_in(root_key, batch * 10000 + num_nodes * 100 + M)
        kz, kp = jax.random.split(case_key)
        Z = jax.random.normal(kz, (batch, M), dtype=jnp.float32)
        W1, b1, W2, b2 = init_params(kp, num_nodes, M)
        params = prepare_decoder_params(W1, b1, W2, b2, num_nodes,
                                        compute_dtype=compute_dtype)
        out = decoder_forward(Z, params)
        out = jax.block_until_ready(out)
        ref = reference_forward(Z, W1, b1, W2, b2, num_nodes)
        assert out.shape == (batch, num_nodes, num_nodes), out.shape
        assert jnp.allclose(out, ref, atol=atol, rtol=rtol), (
            f"mismatch vs reference (B={batch}, N={num_nodes}, M={M}, "
            f"dtype={compute_dtype})")

    # 1) Tile-aligned shapes, f32 compute: grid covers full batch in one tile.
    run_case(batch=128, num_nodes=32, M=8, compute_dtype=jnp.float32,
             atol=1e-5, rtol=1e-5)
    # 2) Odd shapes exercising the padding path (B=20 -> 24, N*N=100 -> 128).
    run_case(batch=20, num_nodes=10, M=6, compute_dtype=jnp.float32,
             atol=1e-5, rtol=1e-5)
    # 3) Default bf16-at-rest weights (halves the dominant W2 HBM stream),
    #    f32 accumulation; looser tolerance vs the f32 reference.
    run_case(batch=128, num_nodes=32, M=8, compute_dtype=jnp.bfloat16,
             atol=5e-2, rtol=5e-2)

    print("KERNEL_OK")
</pallas_src>

<mosaic_0001>
module attributes {stable_mosaic.version = 11 : i64} {
  func.func @decoder_kernel(%arg0: i32, %arg1: i32, %arg2: memref<128x8xf32, #tpu.memory_space<vmem>>, %arg3: memref<8x32xf32, #tpu.memory_space<vmem>>, %arg4: memref<1x32xf32, #tpu.memory_space<vmem>>, %arg5: memref<32x1024xf32, #tpu.memory_space<vmem>>, %arg6: memref<1x1024xf32, #tpu.memory_space<vmem>>, %arg7: memref<128x1024xf32, #tpu.memory_space<vmem>>) attributes {dimension_semantics = [#tpu.dimension_semantics<parallel>, #tpu.dimension_semantics<parallel>], iteration_bounds = array<i64: 1, 1>, scalar_prefetch = 0 : i64, scratch_operands = 0 : i64, tpu.core_type = #tpu.core_type<tc>, window_params = [{transform_indices = @transform_0, window_bounds = array<i64: 128, 8>}, {pipeline_mode = #tpu.pipeline_mode<synchronous>, transform_indices = @transform_1, window_bounds = array<i64: 8, 32>}, {pipeline_mode = #tpu.pipeline_mode<synchronous>, transform_indices = @transform_2, window_bounds = array<i64: 1, 32>}, {transform_indices = @transform_3, window_bounds = array<i64: 32, 1024>}, {transform_indices = @transform_4, window_bounds = array<i64: 1, 1024>}, {transform_indices = @transform_5, window_bounds = array<i64: 128, 1024>}]} {
    %c0 = arith.constant 0 : index
    %c0_0 = arith.constant 0 : index
    %0 = vector.load %arg2[%c0, %c0_0] : memref<128x8xf32, #tpu.memory_space<vmem>>, vector<128x8xf32>
    %c0_1 = arith.constant 0 : index
    %c0_2 = arith.constant 0 : index
    %1 = vector.load %arg3[%c0_1, %c0_2] : memref<8x32xf32, #tpu.memory_space<vmem>>, vector<8x32xf32>
    %cst = arith.constant dense<0.000000e+00> : vector<128x32xf32>
    %2 = tpu.matmul %0, %1, %cst {dimension_numbers = #tpu.dot_dimension_numbers<[1], [0], [0], [1], [0, 0, 1, 1], [], []>} : vector<128x8xf32>, vector<8x32xf32>, vector<128x32xf32> -> vector<128x32xf32>
    %c0_3 = arith.constant 0 : index
    %c0_4 = arith.constant 0 : index
    %3 = vector.load %arg4[%c0_3, %c0_4] : memref<1x32xf32, #tpu.memory_space<vmem>>, vector<1x32xf32>
    %4 = vector.broadcast %3 : vector<1x32xf32> to vector<128x32xf32>
    %5 = arith.addf %2, %4 : vector<128x32xf32>
    %cst_5 = arith.constant 0.000000e+00 : f32
    %6 = vector.broadcast %cst_5 : f32 to vector<128x32xf32>
    %7 = arith.maximumf %5, %6 : vector<128x32xf32>
    %c0_6 = arith.constant 0 : index
    %c0_7 = arith.constant 0 : index
    %8 = vector.load %arg5[%c0_6, %c0_7] : memref<32x1024xf32, #tpu.memory_space<vmem>>, vector<32x1024xf32>
    %cst_8 = arith.constant dense<0.000000e+00> : vector<128x1024xf32>
    %9 = tpu.matmul %7, %8, %cst_8 {dimension_numbers = #tpu.dot_dimension_numbers<[1], [0], [0], [1], [0, 0, 1, 1], [], []>} : vector<128x32xf32>, vector<32x1024xf32>, vector<128x1024xf32> -> vector<128x1024xf32>
    %c0_9 = arith.constant 0 : index
    %c0_10 = arith.constant 0 : index
    %10 = vector.load %arg6[%c0_9, %c0_10] : memref<1x1024xf32, #tpu.memory_space<vmem>>, vector<1x1024xf32>
    %11 = vector.broadcast %10 : vector<1x1024xf32> to vector<128x1024xf32>
    %12 = arith.addf %9, %11 : vector<128x1024xf32>
    %c0_11 = arith.constant 0 : index
    %c0_12 = arith.constant 0 : index
    %13 = vector.load %arg7[%c0_11, %c0_12] : memref<128x1024xf32, #tpu.memory_space<vmem>>, vector<128x1024xf32>
    tpu.vector_store %arg7[%c0_11, %c0_12], %12 {strides = array<i32>} : memref<128x1024xf32, #tpu.memory_space<vmem>>, vector<128x1024xf32>,
    return
  }
  func.func @transform_0(%arg0: i32, %arg1: i32) -> (i32, i32) {
    %c0_i32 = arith.constant 0 : i32
    %c0_i32_0 = arith.constant 0 : i32
    return %arg1, %c0_i32 : i32, i32
  }
  func.func @transform_1(%arg0: i32, %arg1: i32) -> (i32, i32) {
    %c0_i32 = arith.constant 0 : i32
    %c0_i32_0 = arith.constant 0 : i32
    %c0_i32_1 = arith.constant 0 : i32
    return %c0_i32, %c0_i32_0 : i32, i32
  }
  func.func @transform_2(%arg0: i32, %arg1: i32) -> (i32, i32) {
    %c0_i32 = arith.constant 0 : i32
    %c0_i32_0 = arith.constant 0 : i32
    %c0_i32_1 = arith.constant 0 : i32
    return %c0_i32, %c0_i32_0 : i32, i32
  }
  func.func @transform_3(%arg0: i32, %arg1: i32) -> (i32, i32) {
    %c0_i32 = arith.constant 0 : i32
    %c0_i32_0 = arith.constant 0 : i32
    return %c0_i32, %arg0 : i32, i32
  }
  func.func @transform_4(%arg0: i32, %arg1: i32) -> (i32, i32) {
    %c0_i32 = arith.constant 0 : i32
    %c0_i32_0 = arith.constant 0 : i32
    return %c0_i32, %arg0 : i32, i32
  }
  func.func @transform_5(%arg0: i32, %arg1: i32) -> (i32, i32) {
    %c0_i32 = arith.constant 0 : i32
    return %arg1, %arg0 : i32, i32
  }
}

</mosaic_0001>

<llo_original>
// kernel: tpu_custom_call.1
$region0: #{tpu_custom_call.1}
  #allocation0 [shape = 'u32[]', space=smem, size = 0x4, offset = 0x4, fixed_abs, tag = 'smem constant byte address 0x4 - core index']
  #allocation1 [shape = 'u32[144,128]{1,0:T(1,128)}', space=vmem, size = 0x12000, scoped, tag = 'internal scratch']
  %s0 = inlined_call_operand.vmem [shape: f32[128,8], index: 0, kind: input, shape index: {}]
  %s1 = inlined_call_operand.vmem [shape: f32[8,32], index: 1, kind: input, shape index: {}]
  %s2 = inlined_call_operand.vmem [shape: f32[1,32], index: 2, kind: input, shape index: {}]
  %s3 = inlined_call_operand.hbm [shape: f32[32,1024], index: 3, kind: input, shape index: {}]
  %s4 = inlined_call_operand.vmem [shape: f32[1,1024], index: 4, kind: input, shape index: {}]
  %s5 = inlined_call_operand.hbm [shape: f32[128,1024], index: 5, kind: output, shape index: {}]
  %s6 = sld [smem:[#allocation0]]
  $region34: #{tpu_custom_call.1} parent=0
    _
  %s8 = ssub.s32 1, %s6
  %s9 = scalar_select 0, %s8, %s6
  $region1: #{tpu_custom_call.1} parent=0
    #allocation2 [shape = 'u8[131072]{0}', space=vmem, size = 0x20000, scoped, tag = 'input window, operand 3, single buffered']
    #allocation3 [shape = 's32[1]{0}', space=sflag, size = 0x4, scoped, tag = 'scoped memory for tpu_custom_call.1']
    #allocation4 [shape = 's32[1]{0}', space=sflag, size = 0x4, scoped, tag = 'scoped memory for tpu_custom_call.1']
    #allocation5 [shape = 'u8[524288]{0}', space=vmem, size = 0x80000, scoped, tag = 'output window, operand 0, single buffered']
    %10 = vsyncpa [#allocation3], 0
    %11 = vsyncpa [#allocation4], 0
    // Predicated region
    $region2: #{tpu_custom_call.1} parent=1 // pred_check
      _
    $region3: #{tpu_custom_call.1} parent=1 // pred_check_branch
      %13 = sbr.rel (0) target = $region5
    $region4: #{tpu_custom_call.1} parent=1 // pred_region
      _
    $region5: #{tpu_custom_call.1} parent=1 // pred_fallthru
      _
    // Predicated region
    $region6: #{tpu_custom_call.1} parent=1 // pred_check
      _
    $region7: #{tpu_custom_call.1} parent=1 // pred_check_branch
      %15 = sbr.rel (0) target = $region9
    $region8: #{tpu_custom_call.1} parent=1 // pred_region
      _
    $region9: #{tpu_custom_call.1} parent=1 // pred_fallthru
      _
    // Predicated region
    $region10: #{tpu_custom_call.1} parent=1 // pred_check
      _
    $region11: #{tpu_custom_call.1} parent=1 // pred_check_branch
      %17 = sbr.rel (0) target = $region13
    $region12: #{tpu_custom_call.1} parent=1 // pred_region
      _
    $region13: #{tpu_custom_call.1} parent=1 // pred_fallthru
      _
    // Predicated region
    $region14: #{tpu_custom_call.1} parent=1 // pred_check
      _
    $region15: #{tpu_custom_call.1} parent=1 // pred_check_branch
      %19 = sbr.rel (0) target = $region17
    $region16: #{tpu_custom_call.1} parent=1 // pred_region
      %s21 = ssub.s32 4096, 4096
      %22 = vsyncadd [#allocation3], %s21
      %s23 = sshll.u32 [#allocation2], 4
      %s24 = int_to_ptr.vmem [resolvable:$true] %s23
      %29 = dma.hbm_to_vmem [thread:$0]  %s3, 4096, %s24, [#allocation3], 1024, 1024, 64
    $region17: #{tpu_custom_call.1} parent=1 // pred_fallthru
      _
    // Predicated region
    $region18: #{tpu_custom_call.1} parent=1 // pred_check
      _
    $region19: #{tpu_custom_call.1} parent=1 // pred_check_branch
      %31 = sbr.rel (0) target = $region21
    $region20: #{tpu_custom_call.1} parent=1 // pred_region
      _
    $region21: #{tpu_custom_call.1} parent=1 // pred_fallthru
      _
    // Predicated region
    $region22: #{tpu_custom_call.1} parent=1 // pred_check
      _
    $region23: #{tpu_custom_call.1} parent=1 // pred_check_branch
      %33 = sbr.rel (0) target = $region25
    $region24: #{tpu_custom_call.1} parent=1 // pred_region
      %34 = dma.done [#allocation3], 4096
    $region25: #{tpu_custom_call.1} parent=1 // pred_fallthru
      _
    %v35 = vld [vmem:[%s0] sm:$0xff]
    %v36 = vld [vmem:[%s0 + $0x8] sm:$0xff]
    %v37 = vld [vmem:[%s0 + $0x10] sm:$0xff]
    %v38 = vld [vmem:[%s0 + $0x18] sm:$0xff]
    %v39 = vld [vmem:[%s0 + $0x20] sm:$0xff]
    %v40 = vld [vmem:[%s0 + $0x28] sm:$0xff]
    %v41 = vld [vmem:[%s0 + $0x30] sm:$0xff]
    %v42 = vld [vmem:[%s0 + $0x38] sm:$0xff]
    %v43 = vld [vmem:[%s0 + $0x40] sm:$0xff]
    %v44 = vld [vmem:[%s0 + $0x48] sm:$0xff]
    %v45 = vld [vmem:[%s0 + $0x50] sm:$0xff]
    %v46 = vld [vmem:[%s0 + $0x58] sm:$0xff]
    %v47 = vld [vmem:[%s0 + $0x60] sm:$0xff]
    %v48 = vld [vmem:[%s0 + $0x68] sm:$0xff]
    %v49 = vld [vmem:[%s0 + $0x70] sm:$0xff]
    %v50 = vld [vmem:[%s0 + $0x78] sm:$0xff]
    %v51 = vld [vmem:[%s1] sm:$0xff]
    %v52 = vld [vmem:[%s2] sm:$0x1]
    %v54 = vlaneseq
    %v55 = vshrl.u32 %v54, 7
    %v56 = vsub.s32 0, %v55
    %v57 = vrot.slane %v52, %v56
    %vm59 = vcmask 64512
    %v61 = vsel %vm59, %v35, 0
    %v64 = vsel %vm59, %v36, 0
    %v67 = vsel %vm59, %v37, 0
    %v70 = vsel %vm59, %v38, 0
    %v73 = vsel %vm59, %v39, 0
    %v76 = vsel %vm59, %v40, 0
    %v79 = vsel %vm59, %v41, 0
    %v82 = vsel %vm59, %v42, 0
    %v85 = vsel %vm59, %v43, 0
    %v88 = vsel %vm59, %v44, 0
    %v91 = vsel %vm59, %v45, 0
    %v94 = vsel %vm59, %v46, 0
    %v97 = vsel %vm59, %v47, 0
    %v100 = vsel %vm59, %v48, 0
    %v103 = vsel %vm59, %v49, 0
    %v106 = vsel %vm59, %v50, 0
    %108 = vmatprep.subr.mxu0 0.0
    %109 = vmatpush1.msra.mxu0 %v51
    %110 = vmatprep.subr.mxu0 0.0
    %111 = vmatpush1.msra.mxu0 0.0
    %112 = vmatprep.subr.mxu0 0.0
    %113 = vmatpush1.msra.mxu0 0.0
    %114 = vmatprep.subr.mxu0 0.0
    %115 = vmatpush1.msra.mxu0 0.0
    %116 = vmatprep.subr.mxu0 0.0
    %117 = vmatpush1.msra.mxu0 0.0
    %118 = vmatprep.subr.mxu0 0.0
    %119 = vmatpush1.msra.mxu0 0.0
    %120 = vmatprep.subr.mxu0 0.0
    %121 = vmatpush1.msra.mxu0 0.0
    %122 = vmatprep.subr.mxu0 0.0
    %123 = vmatpush1.msra.mxu0 0.0
    %124 = vmatprep.subr.mxu0 0.0
    %125 = vmatpush1.msra.mxu0 0.0
    %126 = vmatprep.subr.mxu0 0.0
    %127 = vmatpush1.msra.mxu0 0.0
    %128 = vmatprep.subr.mxu0 0.0
    %129 = vmatpush1.msra.mxu0 0.0
    %130 = vmatprep.subr.mxu0 0.0
    %131 = vmatpush1.msra.mxu0 0.0
    %132 = vmatprep.subr.mxu0 0.0
    %133 = vmatpush1.msra.mxu0 0.0
    %134 = vmatprep.subr.mxu0 0.0
    %135 = vmatpush1.msra.mxu0 0.0
    %136 = vmatprep.subr.mxu0 0.0
    %137 = vmatpush1.msra.mxu0 0.0
    %138 = vmatprep.subr.mxu0 0.0
    %139 = vmatpush1.msra.mxu0 0.0
    %140 = vmatprep.subr.mxu0 0.0
    %141 = vmatpush1.msra.mxu0 0.0
    %142 = vmatprep.subr.mxu0 0.0
    %143 = vmatpush1.msra.mxu0 0.0
    %144 = vmatprep.subr.mxu0 0.0
    %145 = vmatpush1.msra.mxu0 0.0
    %146 = vmatprep.subr.mxu0 0.0
    %147 = vmatpush1.msra.mxu0 0.0
    %148 = vmatprep.subr.mxu0 0.0
    %149 = vmatpush1.msra.mxu0 0.0
    %150 = vmatprep.subr.mxu0 0.0
    %151 = vmatpush1.msra.mxu0 0.0
    %152 = vmatprep.subr.mxu0 0.0
    %153 = vmatpush1.msra.mxu0 0.0
    %154 = vmatprep.subr.mxu0 0.0
    %155 = vmatpush1.msra.mxu0 0.0
    %156 = vmatprep.subr.mxu0 0.0
    %157 = vmatpush1.msra.mxu0 0.0
    %158 = vmatprep.subr.mxu0 0.0
    %159 = vmatpush1.msra.mxu0 0.0
    %160 = vmatprep.subr.mxu0 0.0
    %161 = vmatpush1.msra.mxu0 0.0
    %162 = vmatprep.subr.mxu0 0.0
    %163 = vmatpush1.msra.mxu0 0.0
    %164 = vmatprep.subr.mxu0 0.0
    %165 = vmatpush1.msra.mxu0 0.0
    %166 = vmatprep.subr.mxu0 0.0
    %167 = vmatpush1.msra.mxu0 0.0
    %168 = vmatprep.subr.mxu0 0.0
    %169 = vmatpush1.msra.mxu0 0.0
    %170 = vmatprep.subr.mxu0 0.0
    %171 = vmatpush1.msra.mxu0 0.0
    %172 = vmatprep.mubr.f32.mxu0 0.0
    %173 = vmatmul.mubr.f32.gmra.mrb[0].mxu0 %v61
    %v174 = vpop.f32.mrb[0].mxu0
    %v175 = vadd.f32 %v57, %v174
    %v176 = vpop.f32.mrb[0].mxu0
    %177 = vmatprep.mubr.f32.mxu0 0.0
    %178 = vmatmul.mubr.f32.gmra.mrb[0].mxu0 %v64
    %v179 = vpop.f32.mrb[0].mxu0
    %v180 = vadd.f32 %v57, %v179
    %v181 = vpop.f32.mrb[0].mxu0
    %182 = vmatprep.mubr.f32.mxu0 0.0
    %183 = vmatmul.mubr.f32.gmra.mrb[0].mxu0 %v67
    %v184 = vpop.f32.mrb[0].mxu0
    %v185 = vadd.f32 %v57, %v184
    %v186 = vpop.f32.mrb[0].mxu0
    %187 = vmatprep.mubr.f32.mxu0 0.0
    %188 = vmatmul.mubr.f32.gmra.mrb[0].mxu0 %v70
    %v189 = vpop.f32.mrb[0].mxu0
    %v190 = vadd.f32 %v57, %v189
    %v191 = vpop.f32.mrb[0].mxu0
    %192 = vmatprep.mubr.f32.mxu0 0.0
    %193 = vmatmul.mubr.f32.gmra.mrb[0].mxu0 %v73
    %v194 = vpop.f32.mrb[0].mxu0
    %v195 = vadd.f32 %v57, %v194
    %v196 = vpop.f32.mrb[0].mxu0
    %197 = vmatprep.mubr.f32.mxu0 0.0
    %198 = vmatmul.mubr.f32.gmra.mrb[0].mxu0 %v76
    %v199 = vpop.f32.mrb[0].mxu0
    %v200 = vadd.f32 %v57, %v199
    %v201 = vpop.f32.mrb[0].mxu0
    %202 = vmatprep.mubr.f32.mxu0 0.0
    %203 = vmatmul.mubr.f32.gmra.mrb[0].mxu0 %v79
    %v204 = vpop.f32.mrb[0].mxu0
    %v205 = vadd.f32 %v57, %v204
    %v206 = vpop.f32.mrb[0].mxu0
    %207 = vmatprep.mubr.f32.mxu0 0.0
    %208 = vmatmul.mubr.f32.gmra.mrb[0].mxu0 %v82
    %v209 = vpop.f32.mrb[0].mxu0
    %v210 = vadd.f32 %v57, %v209
    %v211 = vpop.f32.mrb[0].mxu0
    %212 = vmatprep.mubr.f32.mxu0 0.0
    %213 = vmatmul.mubr.f32.gmra.mrb[0].mxu0 %v85
    %v214 = vpop.f32.mrb[0].mxu0
    %v215 = vadd.f32 %v57, %v214
    %v216 = vpop.f32.mrb[0].mxu0
    %217 = vmatprep.mubr.f32.mxu0 0.0
    %218 = vmatmul.mubr.f32.gmra.mrb[0].mxu0 %v88
    %v219 = vpop.f32.mrb[0].mxu0
    %v220 = vadd.f32 %v57, %v219
    %v221 = vpop.f32.mrb[0].mxu0
    %222 = vmatprep.mubr.f32.mxu0 0.0
    %223 = vmatmul.mubr.f32.gmra.mrb[0].mxu0 %v91
    %v224 = vpop.f32.mrb[0].mxu0
    %v225 = vadd.f32 %v57, %v224
    %v226 = vpop.f32.mrb[0].mxu0
    %227 = vmatprep.mubr.f32.mxu0 0.0
    %228 = vmatmul.mubr.f32.gmra.mrb[0].mxu0 %v94
    %v229 = vpop.f32.mrb[0].mxu0
    %v230 = vadd.f32 %v57, %v229
    %v231 = vpop.f32.mrb[0].mxu0
    %232 = vmatprep.mubr.f32.mxu0 0.0
    %233 = vmatmul.mubr.f32.gmra.mrb[0].mxu0 %v97
    %v234 = vpop.f32.mrb[0].mxu0
    %v235 = vadd.f32 %v57, %v234
    %v236 = vpop.f32.mrb[0].mxu0
    %237 = vmatprep.mubr.f32.mxu0 0.0
    %238 = vmatmul.mubr.f32.gmra.mrb[0].mxu0 %v100
    %v239 = vpop.f32.mrb[0].mxu0
    %v240 = vadd.f32 %v57, %v239
    %v241 = vpop.f32.mrb[0].mxu0
    %242 = vmatprep.mubr.f32.mxu0 0.0
    %243 = vmatmul.mubr.f32.gmra.mrb[0].mxu0 %v103
    %v244 = vpop.f32.mrb[0].mxu0
    %v245 = vadd.f32 %v57, %v244
    %v246 = vpop.f32.mrb[0].mxu0
    %247 = vmatprep.mubr.f32.mxu0 0.0
    %248 = vmatmul.mubr.f32.gmra.mrb[0].mxu0 %v106
    %v249 = vpop.f32.mrb[0].mxu0
    %v250 = vadd.f32 %v57, %v249
    %v251 = vpop.f32.mrb[0].mxu0
    %252 = vdwg.mxu0
    %v253 = vmax.f32 %v175, 0.0
    %v254 = vmax.f32 %v180, 0.0
    %v255 = vmax.f32 %v185, 0.0
    %v256 = vmax.f32 %v190, 0.0
    %v257 = vmax.f32 %v195, 0.0
    %v258 = vmax.f32 %v200, 0.0
    %v259 = vmax.f32 %v205, 0.0
    %v260 = vmax.f32 %v210, 0.0
    %v261 = vmax.f32 %v215, 0.0
    %v262 = vmax.f32 %v220, 0.0
    %v263 = vmax.f32 %v225, 0.0
    %v264 = vmax.f32 %v230, 0.0
    %v265 = vmax.f32 %v235, 0.0
    %v266 = vmax.f32 %v240, 0.0
    %v267 = vmax.f32 %v245, 0.0
    %v268 = vmax.f32 %v250, 0.0
    %v269 = vld [vmem:[#allocation2] sm:$0xff]
    %v270 = vld [vmem:[#allocation2 + $0x8] sm:$0xff]
    %v271 = vld [vmem:[#allocation2 + $0x10] sm:$0xff]
    %v272 = vld [vmem:[#allocation2 + $0x18] sm:$0xff]
    %v273 = vld [vmem:[#allocation2 + $0x20] sm:$0xff]
    %v274 = vld [vmem:[#allocation2 + $0x28] sm:$0xff]
    %v275 = vld [vmem:[#allocation2 + $0x30] sm:$0xff]
    %v276 = vld [vmem:[#allocation2 + $0x38] sm:$0xff]
    %v277 = vld [vmem:[#allocation2 + $0x40] sm:$0xff]
    %v278 = vld [vmem:[#allocation2 + $0x48] sm:$0xff]
    %v279 = vld [vmem:[#allocation2 + $0x50] sm:$0xff]
    %v280 = vld [vmem:[#allocation2 + $0x58] sm:$0xff]
    %v281 = vld [vmem:[#allocation2 + $0x60] sm:$0xff]
    %v282 = vld [vmem:[#allocation2 + $0x68] sm:$0xff]
    %v283 = vld [vmem:[#allocation2 + $0x70] sm:$0xff]
    %v284 = vld [vmem:[#allocation2 + $0x78] sm:$0xff]
    %v285 = vld [vmem:[#allocation2 + $0x80] sm:$0xff]
    %v286 = vld [vmem:[#allocation2 + $0x88] sm:$0xff]
    %v287 = vld [vmem:[#allocation2 + $0x90] sm:$0xff]
    %v288 = vld [vmem:[#allocation2 + $0x98] sm:$0xff]
    %v289 = vld [vmem:[#allocation2 + $0xa0] sm:$0xff]
    %v290 = vld [vmem:[#allocation2 + $0xa8] sm:$0xff]
    %v291 = vld [vmem:[#allocation2 + $0xb0] sm:$0xff]
    %v292 = vld [vmem:[#allocation2 + $0xb8] sm:$0xff]
    %v293 = vld [vmem:[#allocation2 + $0xc0] sm:$0xff]
    %v294 = vld [vmem:[#allocation2 + $0xc8] sm:$0xff]
    %v295 = vld [vmem:[#allocation2 + $0xd0] sm:$0xff]
    %v296 = vld [vmem:[#allocation2 + $0xd8] sm:$0xff]
    %v297 = vld [vmem:[#allocation2 + $0xe0] sm:$0xff]
    %v298 = vld [vmem:[#allocation2 + $0xe8] sm:$0xff]
    %v299 = vld [vmem:[#allocation2 + $0xf0] sm:$0xff]
    %v300 = vld [vmem:[#allocation2 + $0xf8] sm:$0xff]
    %v301 = vld [vmem:[%s4] sm:$0xff]
    %v303 = vlaneseq
    %v304 = vshrl.u32 %v303, 7
    %v305 = vsub.s32 0, %v304
    %v306 = vrot.slane %v301, %v305
    %v307 = vlaneseq
    %v308 = vshrl.u32 %v307, 7
    %v309 = vsub.s32 1, %v308
    %v310 = vrot.slane %v301, %v309
    %v311 = vlaneseq
    %v312 = vshrl.u32 %v311, 7
    %v313 = vsub.s32 2, %v312
    %v314 = vrot.slane %v301, %v313
    %v315 = vlaneseq
    %v316 = vshrl.u32 %v315, 7
    %v317 = vsub.s32 3, %v316
    %v318 = vrot.slane %v301, %v317
    %v319 = vlaneseq
    %v320 = vshrl.u32 %v319, 7
    %v321 = vsub.s32 4, %v320
    %v322 = vrot.slane %v301, %v321
    %v323 = vlaneseq
    %v324 = vshrl.u32 %v323, 7
    %v325 = vsub.s32 5, %v324
    %v326 = vrot.slane %v301, %v325
    %v327 = vlaneseq
    %v328 = vshrl.u32 %v327, 7
    %v329 = vsub.s32 6, %v328
    %v330 = vrot.slane %v301, %v329
    %v331 = vlaneseq
    %v332 = vshrl.u32 %v331, 7
    %v333 = vsub.s32 7, %v332
    %v334 = vrot.slane %v301, %v333
    %vm343 = vcmask 261120
    %v345 = vsel %vm343, %v253, 0
    %v348 = vsel %vm343, %v254, 0
    %v351 = vsel %vm343, %v255, 0
    %v354 = vsel %vm343, %v256, 0
    %v357 = vsel %vm343, %v257, 0
    %v360 = vsel %vm343, %v258, 0
    %v363 = vsel %vm343, %v259, 0
    %v366 = vsel %vm343, %v260, 0
    %v369 = vsel %vm343, %v261, 0
    %v372 = vsel %vm343, %v262, 0
    %v375 = vsel %vm343, %v263, 0
    %v378 = vsel %vm343, %v264, 0
    %v381 = vsel %vm343, %v265, 0
    %v384 = vsel %vm343, %v266, 0
    %v387 = vsel %vm343, %v267, 0
    %v390 = vsel %vm343, %v268, 0
    %392 = vmatprep.subr.mxu0 %v270
    %393 = vmatpush1.msra.mxu0 %v269
    %394 = vmatprep.subr.mxu0 %v278
    %395 = vmatpush1.msra.mxu0 %v277
    %396 = vmatprep.subr.mxu0 %v286
    %397 = vmatpush1.msra.mxu0 %v285
    %398 = vmatprep.subr.mxu0 %v294
    %399 = vmatpush1.msra.mxu0 %v293
    %400 = vmatprep.subr.mxu0 0.0
    %401 = vmatpush1.msra.mxu0 0.0
    %402 = vmatprep.subr.mxu0 0.0
    %403 = vmatpush1.msra.mxu0 0.0
    %404 = vmatprep.subr.mxu0 0.0
    %405 = vmatpush1.msra.mxu0 0.0
    %406 = vmatprep.subr.mxu0 0.0
    %407 = vmatpush1.msra.mxu0 0.0
    %408 = vmatprep.subr.mxu0 0.0
    %409 = vmatpush1.msra.mxu0 0.0
    %410 = vmatprep.subr.mxu0 0.0
    %411 = vmatpush1.msra.mxu0 0.0
    %412 = vmatprep.subr.mxu0 0.0
    %413 = vmatpush1.msra.mxu0 0.0
    %414 = vmatprep.subr.mxu0 0.0
    %415 = vmatpush1.msra.mxu0 0.0
    %416 = vmatprep.subr.mxu0 0.0
    %417 = vmatpush1.msra.mxu0 0.0
    %418 = vmatprep.subr.mxu0 0.0
    %419 = vmatpush1.msra.mxu0 0.0
    %420 = vmatprep.subr.mxu0 0.0
    %421 = vmatpush1.msra.mxu0 0.0
    %422 = vmatprep.subr.mxu0 0.0
    %423 = vmatpush1.msra.mxu0 0.0
    %424 = vmatprep.subr.mxu0 0.0
    %425 = vmatpush1.msra.mxu0 0.0
    %426 = vmatprep.subr.mxu0 0.0
    %427 = vmatpush1.msra.mxu0 0.0
    %428 = vmatprep.subr.mxu0 0.0
    %429 = vmatpush1.msra.mxu0 0.0
    %430 = vmatprep.subr.mxu0 0.0
    %431 = vmatpush1.msra.mxu0 0.0
    %432 = vmatprep.subr.mxu0 0.0
    %433 = vmatpush1.msra.mxu0 0.0
    %434 = vmatprep.subr.mxu0 0.0
    %435 = vmatpush1.msra.mxu0 0.0
    %436 = vmatprep.subr.mxu0 0.0
    %437 = vmatpush1.msra.mxu0 0.0
    %438 = vmatprep.subr.mxu0 0.0
    %439 = vmatpush1.msra.mxu0 0.0
    %440 = vmatprep.subr.mxu0 0.0
    %441 = vmatpush1.msra.mxu0 0.0
    %442 = vmatprep.subr.mxu0 0.0
    %443 = vmatpush1.msra.mxu0 0.0
    %444 = vmatprep.subr.mxu0 0.0
    %445 = vmatpush1.msra.mxu0 0.0
    %446 = vmatprep.subr.mxu0 0.0
    %447 = vmatpush1.msra.mxu0 0.0
    %448 = vmatprep.subr.mxu0 0.0
    %449 = vmatpush1.msra.mxu0 0.0
    %450 = vmatprep.subr.mxu0 0.0
    %451 = vmatpush1.msra.mxu0 0.0
    %452 = vmatprep.subr.mxu0 0.0
    %453 = vmatpush1.msra.mxu0 0.0
    %454 = vmatprep.subr.mxu0 0.0
    %455 = vmatpush1.msra.mxu0 0.0
    %456 = vmatprep.mubr.f32.mxu0 0.0
    %457 = vmatmul.mubr.f32.gmra.mrb[0].mxu0 %v345
    %v458 = vpop.f32.mrb[0].mxu0
    %v459 = vadd.f32 %v306, %v458
    %v460 = vpop.f32.mrb[0].mxu0
    %v461 = vadd.f32 %v310, %v460
    %462 = vmatprep.mubr.f32.mxu0 0.0
    %463 = vmatmul.mubr.f32.gmra.mrb[0].mxu0 %v348
    %v464 = vpop.f32.mrb[0].mxu0
    %v465 = vadd.f32 %v306, %v464
    %v466 = vpop.f32.mrb[0].mxu0
    %v467 = vadd.f32 %v310, %v466
    %468 = vmatprep.mubr.f32.mxu0 0.0
    %469 = vmatmul.mubr.f32.gmra.mrb[0].mxu0 %v351
    %v470 = vpop.f32.mrb[0].mxu0
    %v471 = vadd.f32 %v306, %v470
    %v472 = vpop.f32.mrb[0].mxu0
    %v473 = vadd.f32 %v310, %v472
    %474 = vmatprep.mubr.f32.mxu0 0.0
    %475 = vmatmul.mubr.f32.gmra.mrb[0].mxu0 %v354
    %v476 = vpop.f32.mrb[0].mxu0
    %v477 = vadd.f32 %v306, %v476
    %v478 = vpop.f32.mrb[0].mxu0
    %v479 = vadd.f32 %v310, %v478
    %480 = vmatprep.mubr.f32.mxu0 0.0
    %481 = vmatmul.mubr.f32.gmra.mrb[0].mxu0 %v357
    %v482 = vpop.f32.mrb[0].mxu0
    %v483 = vadd.f32 %v306, %v482
    %v484 = vpop.f32.mrb[0].mxu0
    %v485 = vadd.f32 %v310, %v484
    %486 = vmatprep.mubr.f32.mxu0 0.0
    %487 = vmatmul.mubr.f32.gmra.mrb[0].mxu0 %v360
    %v488 = vpop.f32.mrb[0].mxu0
    %v489 = vadd.f32 %v306, %v488
    %v490 = vpop.f32.mrb[0].mxu0
    %v491 = vadd.f32 %v310, %v490
    %492 = vmatprep.mubr.f32.mxu0 0.0
    %493 = vmatmul.mubr.f32.gmra.mrb[0].mxu0 %v363
    %v494 = vpop.f32.mrb[0].mxu0
    %v495 = vadd.f32 %v306, %v494
    %v496 = vpop.f32.mrb[0].mxu0
    %v497 = vadd.f32 %v310, %v496
    %498 = vmatprep.mubr.f32.mxu0 0.0
    %499 = vmatmul.mubr.f32.gmra.mrb[0].mxu0 %v366
    %v500 = vpop.f32.mrb[0].mxu0
    %v501 = vadd.f32 %v306, %v500
    %v502 = vpop.f32.mrb[0].mxu0
    %v503 = vadd.f32 %v310, %v502
    %504 = vmatprep.mubr.f32.mxu0 0.0
    %505 = vmatmul.mubr.f32.gmra.mrb[0].mxu0 %v369
    %v506 = vpop.f32.mrb[0].mxu0
    %v507 = vadd.f32 %v306, %v506
    %v508 = vpop.f32.mrb[0].mxu0
    %v509 = vadd.f32 %v310, %v508
    %510 = vmatprep.mubr.f32.mxu0 0.0
    %511 = vmatmul.mubr.f32.gmra.mrb[0].mxu0 %v372
    %v512 = vpop.f32.mrb[0].mxu0
    %v513 = vadd.f32 %v306, %v512
    %v514 = vpop.f32.mrb[0].mxu0
    %v515 = vadd.f32 %v310, %v514
    %516 = vmatprep.mubr.f32.mxu0 0.0
    %517 = vmatmul.mubr.f32.gmra.mrb[0].mxu0 %v375
    %v518 = vpop.f32.mrb[0].mxu0
    %v519 = vadd.f32 %v306, %v518
    %v520 = vpop.f32.mrb[0].mxu0
    %v521 = vadd.f32 %v310, %v520
    %522 = vmatprep.mubr.f32.mxu0 0.0
    %523 = vmatmul.mubr.f32.gmra.mrb[0].mxu0 %v378
    %v524 = vpop.f32.mrb[0].mxu0
    %v525 = vadd.f32 %v306, %v524
    %v526 = vpop.f32.mrb[0].mxu0
    %v527 = vadd.f32 %v310, %v526
    %528 = vmatprep.mubr.f32.mxu0 0.0
    %529 = vmatmul.mubr.f32.gmra.mrb[0].mxu0 %v381
    %v530 = vpop.f32.mrb[0].mxu0
    %v531 = vadd.f32 %v306, %v530
    %v532 = vpop.f32.mrb[0].mxu0
    %v533 = vadd.f32 %v310, %v532
    %534 = vmatprep.mubr.f32.mxu0 0.0
    %535 = vmatmul.mubr.f32.gmra.mrb[0].mxu0 %v384
    %v536 = vpop.f32.mrb[0].mxu0
    %v537 = vadd.f32 %v306, %v536
    %v538 = vpop.f32.mrb[0].mxu0
    %v539 = vadd.f32 %v310, %v538
    %540 = vmatprep.mubr.f32.mxu0 0.0
    %541 = vmatmul.mubr.f32.gmra.mrb[0].mxu0 %v387
    %v542 = vpop.f32.mrb[0].mxu0
    %v543 = vadd.f32 %v306, %v542
    %v544 = vpop.f32.mrb[0].mxu0
    %v545 = vadd.f32 %v310, %v544
    %546 = vmatprep.mubr.f32.mxu0 0.0
    %547 = vmatmul.mubr.f32.gmra.mrb[0].mxu0 %v390
    %v548 = vpop.f32.mrb[0].mxu0
    %v549 = vadd.f32 %v306, %v548
    %v550 = vpop.f32.mrb[0].mxu0
    %v551 = vadd.f32 %v310, %v550
    %552 = vdwg.mxu0
    %553 = vmatprep.subr.mxu0 %v272
    %554 = vmatpush1.msra.mxu0 %v271
    %555 = vmatprep.subr.mxu0 %v280
    %556 = vmatpush1.msra.mxu0 %v279
    %557 = vmatprep.subr.mxu0 %v288
    %558 = vmatpush1.msra.mxu0 %v287
    %559 = vmatprep.subr.mxu0 %v296
    %560 = vmatpush1.msra.mxu0 %v295
    %561 = vmatprep.subr.mxu0 0.0
    %562 = vmatpush1.msra.mxu0 0.0
    %563 = vmatprep.subr.mxu0 0.0
    %564 = vmatpush1.msra.mxu0 0.0
    %565 = vmatprep.subr.mxu0 0.0
    %566 = vmatpush1.msra.mxu0 0.0
    %567 = vmatprep.subr.mxu0 0.0
    %568 = vmatpush1.msra.mxu0 0.0
    %569 = vmatprep.subr.mxu0 0.0
    %570 = vmatpush1.msra.mxu0 0.0
    %571 = vmatprep.subr.mxu0 0.0
    %572 = vmatpush1.msra.mxu0 0.0
    %573 = vmatprep.subr.mxu0 0.0
    %574 = vmatpush1.msra.mxu0 0.0
    %575 = vmatprep.subr.mxu0 0.0
    %576 = vmatpush1.msra.mxu0 0.0
    %577 = vmatprep.subr.mxu0 0.0
    %578 = vmatpush1.msra.mxu0 0.0
    %579 = vmatprep.subr.mxu0 0.0
    %580 = vmatpush1.msra.mxu0 0.0
    %581 = vmatprep.subr.mxu0 0.0
    %582 = vmatpush1.msra.mxu0 0.0
    %583 = vmatprep.subr.mxu0 0.0
    %584 = vmatpush1.msra.mxu0 0.0
    %585 = vmatprep.subr.mxu0 0.0
    %586 = vmatpush1.msra.mxu0 0.0
    %587 = vmatprep.subr.mxu0 0.0
    %588 = vmatpush1.msra.mxu0 0.0
    %589 = vmatprep.subr.mxu0 0.0
    %590 = vmatpush1.msra.mxu0 0.0
    %591 = vmatprep.subr.mxu0 0.0
    %592 = vmatpush1.msra.mxu0 0.0
    %593 = vmatprep.subr.mxu0 0.0
    %594 = vmatpush1.msra.mxu0 0.0
    %595 = vmatprep.subr.mxu0 0.0
    %596 = vmatpush1.msra.mxu0 0.0
    %597 = vmatprep.subr.mxu0 0.0
    %598 = vmatpush1.msra.mxu0 0.0
    %599 = vmatprep.subr.mxu0 0.0
    %600 = vmatpush1.msra.mxu0 0.0
    %601 = vmatprep.subr.mxu0 0.0
    %602 = vmatpush1.msra.mxu0 0.0
    %603 = vmatprep.subr.mxu0 0.0
    %604 = vmatpush1.msra.mxu0 0.0
    %605 = vmatprep.subr.mxu0 0.0
    %606 = vmatpush1.msra.mxu0 0.0
    %607 = vmatprep.subr.mxu0 0.0
    %608 = vmatpush1.msra.mxu0 0.0
    %609 = vmatprep.subr.mxu0 0.0
    %610 = vmatpush1.msra.mxu0 0.0
    %611 = vmatprep.subr.mxu0 0.0
    %612 = vmatpush1.msra.mxu0 0.0
    %613 = vmatprep.subr.mxu0 0.0
    %614 = vmatpush1.msra.mxu0 0.0
    %615 = vmatprep.subr.mxu0 0.0
    %616 = vmatpush1.msra.mxu0 0.0
    %617 = vmatprep.mubr.f32.mxu0 0.0
    %618 = vmatmul.mubr.f32.gmra.mrb[0].mxu0 %v345
    %v619 = vpop.f32.mrb[0].mxu0
    %v620 = vadd.f32 %v314, %v619
    %v621 = vpop.f32.mrb[0].mxu0
    %v622 = vadd.f32 %v318, %v621
    %623 = vmatprep.mubr.f32.mxu0 0.0
    %624 = vmatmul.mubr.f32.gmra.mrb[0].mxu0 %v348
    %v625 = vpop.f32.mrb[0].mxu0
    %v626 = vadd.f32 %v314, %v625
    %v627 = vpop.f32.mrb[0].mxu0
    %v628 = vadd.f32 %v318, %v627
    %629 = vmatprep.mubr.f32.mxu0 0.0
    %630 = vmatmul.mubr.f32.gmra.mrb[0].mxu0 %v351
    %v631 = vpop.f32.mrb[0].mxu0
    %v632 = vadd.f32 %v314, %v631
    %v633 = vpop.f32.mrb[0].mxu0
    %v634 = vadd.f32 %v318, %v633
    %635 = vmatprep.mubr.f32.mxu0 0.0
    %636 = vmatmul.mubr.f32.gmra.mrb[0].mxu0 %v354
    %v637 = vpop.f32.mrb[0].mxu0
    %v638 = vadd.f32 %v314, %v637
    %v639 = vpop.f32.mrb[0].mxu0
    %v640 = vadd.f32 %v318, %v639
    %641 = vmatprep.mubr.f32.mxu0 0.0
    %642 = vmatmul.mubr.f32.gmra.mrb[0].mxu0 %v357
    %v643 = vpop.f32.mrb[0].mxu0
    %v644 = vadd.f32 %v314, %v643
    %v645 = vpop.f32.mrb[0].mxu0
    %v646 = vadd.f32 %v318, %v645
    %647 = vmatprep.mubr.f32.mxu0 0.0
    %648 = vmatmul.mubr.f32.gmra.mrb[0].mxu0 %v360
    %v649 = vpop.f32.mrb[0].mxu0
    %v650 = vadd.f32 %v314, %v649
    %v651 = vpop.f32.mrb[0].mxu0
    %v652 = vadd.f32 %v318, %v651
    %653 = vmatprep.mubr.f32.mxu0 0.0
    %654 = vmatmul.mubr.f32.gmra.mrb[0].mxu0 %v363
    %v655 = vpop.f32.mrb[0].mxu0
    %v656 = vadd.f32 %v314, %v655
    %v657 = vpop.f32.mrb[0].mxu0
    %v658 = vadd.f32 %v318, %v657
    %659 = vmatprep.mubr.f32.mxu0 0.0
    %660 = vmatmul.mubr.f32.gmra.mrb[0].mxu0 %v366
    %v661 = vpop.f32.mrb[0].mxu0
    %v662 = vadd.f32 %v314, %v661
    %v663 = vpop.f32.mrb[0].mxu0
    %v664 = vadd.f32 %v318, %v663
    %665 = vmatprep.mubr.f32.mxu0 0.0
    %666 = vmatmul.mubr.f32.gmra.mrb[0].mxu0 %v369
    %v667 = vpop.f32.mrb[0].mxu0
    %v668 = vadd.f32 %v314, %v667
    %v669 = vpop.f32.mrb[0].mxu0
    %v670 = vadd.f32 %v318, %v669
    %671 = vmatprep.mubr.f32.mxu0 0.0
    %672 = vmatmul.mubr.f32.gmra.mrb[0].mxu0 %v372
    %v673 = vpop.f32.mrb[0].mxu0
    %v674 = vadd.f32 %v314, %v673
    %v675 = vpop.f32.mrb[0].mxu0
    %v676 = vadd.f32 %v318, %v675
    %677 = vmatprep.mubr.f32.mxu0 0.0
    %678 = vmatmul.mubr.f32.gmra.mrb[0].mxu0 %v375
    %v679 = vpop.f32.mrb[0].mxu0
    %v680 = vadd.f32 %v314, %v679
    %v681 = vpop.f32.mrb[0].mxu0
    %v682 = vadd.f32 %v318, %v681
    %683 = vmatprep.mubr.f32.mxu0 0.0
    %684 = vmatmul.mubr.f32.gmra.mrb[0].mxu0 %v378
    %v685 = vpop.f32.mrb[0].mxu0
    %v686 = vadd.f32 %v314, %v685
    %v687 = vpop.f32.mrb[0].mxu0
    %v688 = vadd.f32 %v318, %v687
    %689 = vmatprep.mubr.f32.mxu0 0.0
    %690 = vmatmul.mubr.f32.gmra.mrb[0].mxu0 %v381
    %v691 = vpop.f32.mrb[0].mxu0
    %v692 = vadd.f32 %v314, %v691
    %v693 = vpop.f32.mrb[0].mxu0
    %v694 = vadd.f32 %v318, %v693
    %695 = vmatprep.mubr.f32.mxu0 0.0
    %696 = vmatmul.mubr.f32.gmra.mrb[0].mxu0 %v384
    %v697 = vpop.f32.mrb[0].mxu0
    %v698 = vadd.f32 %v314, %v697
    %v699 = vpop.f32.mrb[0].mxu0
    %v700 = vadd.f32 %v318, %v699
    %701 = vmatprep.mubr.f32.mxu0 0.0
    %702 = vmatmul.mubr.f32.gmra.mrb[0].mxu0 %v387
    %v703 = vpop.f32.mrb[0].mxu0
    %v704 = vadd.f32 %v314, %v703
    %v705 = vpop.f32.mrb[0].mxu0
    %v706 = vadd.f32 %v318, %v705
    %707 = vmatprep.mubr.f32.mxu0 0.0
    %708 = vmatmul.mubr.f32.gmra.mrb[0].mxu0 %v390
    %v709 = vpop.f32.mrb[0].mxu0
    %v710 = vadd.f32 %v314, %v709
    %v711 = vpop.f32.mrb[0].mxu0
    %v712 = vadd.f32 %v318, %v711
    %713 = vdwg.mxu0
    %714 = vmatprep.subr.mxu0 %v274
    %715 = vmatpush1.msra.mxu0 %v273
    %716 = vmatprep.subr.mxu0 %v282
    %717 = vmatpush1.msra.mxu0 %v281
    %718 = vmatprep.subr.mxu0 %v290
    %719 = vmatpush1.msra.mxu0 %v289
    %720 = vmatprep.subr.mxu0 %v298
    %721 = vmatpush1.msra.mxu0 %v297
    %722 = vmatprep.subr.mxu0 0.0
    %723 = vmatpush1.msra.mxu0 0.0
    %724 = vmatprep.subr.mxu0 0.0
    %725 = vmatpush1.msra.mxu0 0.0
    %726 = vmatprep.subr.mxu0 0.0
    %727 = vmatpush1.msra.mxu0 0.0
    %728 = vmatprep.subr.mxu0 0.0
    %729 = vmatpush1.msra.mxu0 0.0
    %730 = vmatprep.subr.mxu0 0.0
    %731 = vmatpush1.msra.mxu0 0.0
    %732 = vmatprep.subr.mxu0 0.0
    %733 = vmatpush1.msra.mxu0 0.0
    %734 = vmatprep.subr.mxu0 0.0
    %735 = vmatpush1.msra.mxu0 0.0
    %736 = vmatprep.subr.mxu0 0.0
    %737 = vmatpush1.msra.mxu0 0.0
    %738 = vmatprep.subr.mxu0 0.0
    %739 = vmatpush1.msra.mxu0 0.0
    %740 = vmatprep.subr.mxu0 0.0
    %741 = vmatpush1.msra.mxu0 0.0
    %742 = vmatprep.subr.mxu0 0.0
    %743 = vmatpush1.msra.mxu0 0.0
    %744 = vmatprep.subr.mxu0 0.0
    %745 = vmatpush1.msra.mxu0 0.0
    %746 = vmatprep.subr.mxu0 0.0
    %747 = vmatpush1.msra.mxu0 0.0
    %748 = vmatprep.subr.mxu0 0.0
    %749 = vmatpush1.msra.mxu0 0.0
    %750 = vmatprep.subr.mxu0 0.0
    %751 = vmatpush1.msra.mxu0 0.0
    %752 = vmatprep.subr.mxu0 0.0
    %753 = vmatpush1.msra.mxu0 0.0
    %754 = vmatprep.subr.mxu0 0.0
    %755 = vmatpush1.msra.mxu0 0.0
    %756 = vmatprep.subr.mxu0 0.0
    %757 = vmatpush1.msra.mxu0 0.0
    %758 = vmatprep.subr.mxu0 0.0
    %759 = vmatpush1.msra.mxu0 0.0
    %760 = vmatprep.subr.mxu0 0.0
    %761 = vmatpush1.msra.mxu0 0.0
    %762 = vmatprep.subr.mxu0 0.0
    %763 = vmatpush1.msra.mxu0 0.0
    %764 = vmatprep.subr.mxu0 0.0
    %765 = vmatpush1.msra.mxu0 0.0
    %766 = vmatprep.subr.mxu0 0.0
    %767 = vmatpush1.msra.mxu0 0.0
    %768 = vmatprep.subr.mxu0 0.0
    %769 = vmatpush1.msra.mxu0 0.0
    %770 = vmatprep.subr.mxu0 0.0
    %771 = vmatpush1.msra.mxu0 0.0
    %772 = vmatprep.subr.mxu0 0.0
    %773 = vmatpush1.msra.mxu0 0.0
    %774 = vmatprep.subr.mxu0 0.0
    %775 = vmatpush1.msra.mxu0 0.0
    %776 = vmatprep.subr.mxu0 0.0
    %777 = vmatpush1.msra.mxu0 0.0
    %778 = vmatprep.mubr.f32.mxu0 0.0
    %779 = vmatmul.mubr.f32.gmra.mrb[0].mxu0 %v345
    %v780 = vpop.f32.mrb[0].mxu0
    %v781 = vadd.f32 %v322, %v780
    %v782 = vpop.f32.mrb[0].mxu0
    %v783 = vadd.f32 %v326, %v782
    %784 = vmatprep.mubr.f32.mxu0 0.0
    %785 = vmatmul.mubr.f32.gmra.mrb[0].mxu0 %v348
    %v786 = vpop.f32.mrb[0].mxu0
    %v787 = vadd.f32 %v322, %v786
    %v788 = vpop.f32.mrb[0].mxu0
    %v789 = vadd.f32 %v326, %v788
    %790 = vmatprep.mubr.f32.mxu0 0.0
    %791 = vmatmul.mubr.f32.gmra.mrb[0].mxu0 %v351
    %v792 = vpop.f32.mrb[0].mxu0
    %v793 = vadd.f32 %v322, %v792
    %v794 = vpop.f32.mrb[0].mxu0
    %v795 = vadd.f32 %v326, %v794
    %796 = vmatprep.mubr.f32.mxu0 0.0
    %797 = vmatmul.mubr.f32.gmra.mrb[0].mxu0 %v354
    %v798 = vpop.f32.mrb[0].mxu0
    %v799 = vadd.f32 %v322, %v798
    %v800 = vpop.f32.mrb[0].mxu0
    %v801 = vadd.f32 %v326, %v800
    %802 = vmatprep.mubr.f32.mxu0 0.0
    %803 = vmatmul.mubr.f32.gmra.mrb[0].mxu0 %v357
    %v804 = vpop.f32.mrb[0].mxu0
    %v805 = vadd.f32 %v322, %v804
    %v806 = vpop.f32.mrb[0].mxu0
    %v807 = vadd.f32 %v326, %v806
    %808 = vmatprep.mubr.f32.mxu0 0.0
    %809 = vmatmul.mubr.f32.gmra.mrb[0].mxu0 %v360
    %v810 = vpop.f32.mrb[0].mxu0
    %v811 = vadd.f32 %v322, %v810
    %v812 = vpop.f32.mrb[0].mxu0
    %v813 = vadd.f32 %v326, %v812
    %814 = vmatprep.mubr.f32.mxu0 0.0
    %815 = vmatmul.mubr.f32.gmra.mrb[0].mxu0 %v363
    %v816 = vpop.f32.mrb[0].mxu0
    %v817 = vadd.f32 %v322, %v816
    %v818 = vpop.f32.mrb[0].mxu0
    %v819 = vadd.f32 %v326, %v818
    %820 = vmatprep.mubr.f32.mxu0 0.0
    %821 = vmatmul.mubr.f32.gmra.mrb[0].mxu0 %v366
    %v822 = vpop.f32.mrb[0].mxu0
    %v823 = vadd.f32 %v322, %v822
    %v824 = vpop.f32.mrb[0].mxu0
    %v825 = vadd.f32 %v326, %v824
    %826 = vmatprep.mubr.f32.mxu0 0.0
    %827 = vmatmul.mubr.f32.gmra.mrb[0].mxu0 %v369
    %v828 = vpop.f32.mrb[0].mxu0
    %v829 = vadd.f32 %v322, %v828
    %v830 = vpop.f32.mrb[0].mxu0
    %v831 = vadd.f32 %v326, %v830
    %832 = vmatprep.mubr.f32.mxu0 0.0
    %833 = vmatmul.mubr.f32.gmra.mrb[0].mxu0 %v372
    %v834 = vpop.f32.mrb[0].mxu0
    %v835 = vadd.f32 %v322, %v834
    %v836 = vpop.f32.mrb[0].mxu0
    %v837 = vadd.f32 %v326, %v836
    %838 = vmatprep.mubr.f32.mxu0 0.0
    %839 = vmatmul.mubr.f32.gmra.mrb[0].mxu0 %v375
    %v840 = vpop.f32.mrb[0].mxu0
    %v841 = vadd.f32 %v322, %v840
    %v842 = vpop.f32.mrb[0].mxu0
    %v843 = vadd.f32 %v326, %v842
    %844 = vmatprep.mubr.f32.mxu0 0.0
    %845 = vmatmul.mubr.f32.gmra.mrb[0].mxu0 %v378
    %v846 = vpop.f32.mrb[0].mxu0
    %v847 = vadd.f32 %v322, %v846
    %v848 = vpop.f32.mrb[0].mxu0
    %v849 = vadd.f32 %v326, %v848
    %850 = vmatprep.mubr.f32.mxu0 0.0
    %851 = vmatmul.mubr.f32.gmra.mrb[0].mxu0 %v381
    %v852 = vpop.f32.mrb[0].mxu0
    %v853 = vadd.f32 %v322, %v852
    %v854 = vpop.f32.mrb[0].mxu0
    %v855 = vadd.f32 %v326, %v854
    %856 = vmatprep.mubr.f32.mxu0 0.0
    %857 = vmatmul.mubr.f32.gmra.mrb[0].mxu0 %v384
    %v858 = vpop.f32.mrb[0].mxu0
    %v859 = vadd.f32 %v322, %v858
    %v860 = vpop.f32.mrb[0].mxu0
    %v861 = vadd.f32 %v326, %v860
    %862 = vmatprep.mubr.f32.mxu0 0.0
    %863 = vmatmul.mubr.f32.gmra.mrb[0].mxu0 %v387
    %v864 = vpop.f32.mrb[0].mxu0
    %v865 = vadd.f32 %v322, %v864
    %v866 = vpop.f32.mrb[0].mxu0
    %v867 = vadd.f32 %v326, %v866
    %868 = vmatprep.mubr.f32.mxu0 0.0
    %869 = vmatmul.mubr.f32.gmra.mrb[0].mxu0 %v390
    %v870 = vpop.f32.mrb[0].mxu0
    %v871 = vadd.f32 %v322, %v870
    %v872 = vpop.f32.mrb[0].mxu0
    %v873 = vadd.f32 %v326, %v872
    %874 = vdwg.mxu0
    %875 = vmatprep.subr.mxu0 %v276
    %876 = vmatpush1.msra.mxu0 %v275
    %877 = vmatprep.subr.mxu0 %v284
    %878 = vmatpush1.msra.mxu0 %v283
    %879 = vmatprep.subr.mxu0 %v292
    %880 = vmatpush1.msra.mxu0 %v291
    %881 = vmatprep.subr.mxu0 %v300
    %882 = vmatpush1.msra.mxu0 %v299
    %883 = vmatprep.subr.mxu0 0.0
    %884 = vmatpush1.msra.mxu0 0.0
    %885 = vmatprep.subr.mxu0 0.0
    %886 = vmatpush1.msra.mxu0 0.0
    %887 = vmatprep.subr.mxu0 0.0
    %888 = vmatpush1.msra.mxu0 0.0
    %889 = vmatprep.subr.mxu0 0.0
    %890 = vmatpush1.msra.mxu0 0.0
    %891 = vmatprep.subr.mxu0 0.0
    %892 = vmatpush1.msra.mxu0 0.0
    %893 = vmatprep.subr.mxu0 0.0
    %894 = vmatpush1.msra.mxu0 0.0
    %895 = vmatprep.subr.mxu0 0.0
    %896 = vmatpush1.msra.mxu0 0.0
    %897 = vmatprep.subr.mxu0 0.0
    %898 = vmatpush1.msra.mxu0 0.0
    %899 = vmatprep.subr.mxu0 0.0
    %900 = vmatpush1.msra.mxu0 0.0
    %901 = vmatprep.subr.mxu0 0.0
    %902 = vmatpush1.msra.mxu0 0.0
    %903 = vmatprep.subr.mxu0 0.0
    %904 = vmatpush1.msra.mxu0 0.0
    %905 = vmatprep.subr.mxu0 0.0
    %906 = vmatpush1.msra.mxu0 0.0
    %907 = vmatprep.subr.mxu0 0.0
    %908 = vmatpush1.msra.mxu0 0.0
    %909 = vmatprep.subr.mxu0 0.0
    %910 = vmatpush1.msra.mxu0 0.0
    %911 = vmatprep.subr.mxu0 0.0
    %912 = vmatpush1.msra.mxu0 0.0
    %913 = vmatprep.subr.mxu0 0.0
    %914 = vmatpush1.msra.mxu0 0.0
    %915 = vmatprep.subr.mxu0 0.0
    %916 = vmatpush1.msra.mxu0 0.0
    %917 = vmatprep.subr.mxu0 0.0
    %918 = vmatpush1.msra.mxu0 0.0
    %919 = vmatprep.subr.mxu0 0.0
    %920 = vmatpush1.msra.mxu0 0.0
    %921 = vmatprep.subr.mxu0 0.0
    %922 = vmatpush1.msra.mxu0 0.0
    %923 = vmatprep.subr.mxu0 0.0
    %924 = vmatpush1.msra.mxu0 0.0
    %925 = vmatprep.subr.mxu0 0.0
    %926 = vmatpush1.msra.mxu0 0.0
    %927 = vmatprep.subr.mxu0 0.0
    %928 = vmatpush1.msra.mxu0 0.0
    %929 = vmatprep.subr.mxu0 0.0
    %930 = vmatpush1.msra.mxu0 0.0
    %931 = vmatprep.subr.mxu0 0.0
    %932 = vmatpush1.msra.mxu0 0.0
    %933 = vmatprep.subr.mxu0 0.0
    %934 = vmatpush1.msra.mxu0 0.0
    %935 = vmatprep.subr.mxu0 0.0
    %936 = vmatpush1.msra.mxu0 0.0
    %937 = vmatprep.subr.mxu0 0.0
    %938 = vmatpush1.msra.mxu0 0.0
    %939 = vmatprep.mubr.f32.mxu0 0.0
    %940 = vmatmul.mubr.f32.gmra.mrb[0].mxu0 %v345
    %v941 = vpop.f32.mrb[0].mxu0
    %v942 = vadd.f32 %v330, %v941
    %v943 = vpop.f32.mrb[0].mxu0
    %v944 = vadd.f32 %v334, %v943
    %945 = vmatprep.mubr.f32.mxu0 0.0
    %946 = vmatmul.mubr.f32.gmra.mrb[0].mxu0 %v348
    %v947 = vpop.f32.mrb[0].mxu0
    %v948 = vadd.f32 %v330, %v947
    %v949 = vpop.f32.mrb[0].mxu0
    %v950 = vadd.f32 %v334, %v949
    %951 = vmatprep.mubr.f32.mxu0 0.0
    %952 = vmatmul.mubr.f32.gmra.mrb[0].mxu0 %v351
    %v953 = vpop.f32.mrb[0].mxu0
    %v954 = vadd.f32 %v330, %v953
    %v955 = vpop.f32.mrb[0].mxu0
    %v956 = vadd.f32 %v334, %v955
    %957 = vmatprep.mubr.f32.mxu0 0.0
    %958 = vmatmul.mubr.f32.gmra.mrb[0].mxu0 %v354
    %v959 = vpop.f32.mrb[0].mxu0
    %v960 = vadd.f32 %v330, %v959
    %v961 = vpop.f32.mrb[0].mxu0
    %v962 = vadd.f32 %v334, %v961
    %963 = vmatprep.mubr.f32.mxu0 0.0
    %964 = vmatmul.mubr.f32.gmra.mrb[0].mxu0 %v357
    %v965 = vpop.f32.mrb[0].mxu0
    %v966 = vadd.f32 %v330, %v965
    %v967 = vpop.f32.mrb[0].mxu0
    %v968 = vadd.f32 %v334, %v967
    %969 = vmatprep.mubr.f32.mxu0 0.0
    %970 = vmatmul.mubr.f32.gmra.mrb[0].mxu0 %v360
    %v971 = vpop.f32.mrb[0].mxu0
    %v972 = vadd.f32 %v330, %v971
    %v973 = vpop.f32.mrb[0].mxu0
    %v974 = vadd.f32 %v334, %v973
    %975 = vmatprep.mubr.f32.mxu0 0.0
    %976 = vmatmul.mubr.f32.gmra.mrb[0].mxu0 %v363
    %v977 = vpop.f32.mrb[0].mxu0
    %v978 = vadd.f32 %v330, %v977
    %v979 = vpop.f32.mrb[0].mxu0
    %v980 = vadd.f32 %v334, %v979
    %981 = vmatprep.mubr.f32.mxu0 0.0
    %982 = vmatmul.mubr.f32.gmra.mrb[0].mxu0 %v366
    %v983 = vpop.f32.mrb[0].mxu0
    %v984 = vadd.f32 %v330, %v983
    %v985 = vpop.f32.mrb[0].mxu0
    %v986 = vadd.f32 %v334, %v985
    %987 = vmatprep.mubr.f32.mxu0 0.0
    %988 = vmatmul.mubr.f32.gmra.mrb[0].mxu0 %v369
    %v989 = vpop.f32.mrb[0].mxu0
    %v990 = vadd.f32 %v330, %v989
    %v991 = vpop.f32.mrb[0].mxu0
    %v992 = vadd.f32 %v334, %v991
    %993 = vmatprep.mubr.f32.mxu0 0.0
    %994 = vmatmul.mubr.f32.gmra.mrb[0].mxu0 %v372
    %v995 = vpop.f32.mrb[0].mxu0
    %v996 = vadd.f32 %v330, %v995
    %v997 = vpop.f32.mrb[0].mxu0
    %v998 = vadd.f32 %v334, %v997
    %999 = vmatprep.mubr.f32.mxu0 0.0
    %1000 = vmatmul.mubr.f32.gmra.mrb[0].mxu0 %v375
    %v1001 = vpop.f32.mrb[0].mxu0
    %v1002 = vadd.f32 %v330, %v1001
    %v1003 = vpop.f32.mrb[0].mxu0
    %v1004 = vadd.f32 %v334, %v1003
    %1005 = vmatprep.mubr.f32.mxu0 0.0
    %1006 = vmatmul.mubr.f32.gmra.mrb[0].mxu0 %v378
    %v1007 = vpop.f32.mrb[0].mxu0
    %v1008 = vadd.f32 %v330, %v1007
    %v1009 = vpop.f32.mrb[0].mxu0
    %v1010 = vadd.f32 %v334, %v1009
    %1011 = vmatprep.mubr.f32.mxu0 0.0
    %1012 = vmatmul.mubr.f32.gmra.mrb[0].mxu0 %v381
    %v1013 = vpop.f32.mrb[0].mxu0
    %v1014 = vadd.f32 %v330, %v1013
    %v1015 = vpop.f32.mrb[0].mxu0
    %v1016 = vadd.f32 %v334, %v1015
    %1017 = vmatprep.mubr.f32.mxu0 0.0
    %1018 = vmatmul.mubr.f32.gmra.mrb[0].mxu0 %v384
    %v1019 = vpop.f32.mrb[0].mxu0
    %v1020 = vadd.f32 %v330, %v1019
    %v1021 = vpop.f32.mrb[0].mxu0
    %v1022 = vadd.f32 %v334, %v1021
    %1023 = vmatprep.mubr.f32.mxu0 0.0
    %1024 = vmatmul.mubr.f32.gmra.mrb[0].mxu0 %v387
    %v1025 = vpop.f32.mrb[0].mxu0
    %v1026 = vadd.f32 %v330, %v1025
    %v1027 = vpop.f32.mrb[0].mxu0
    %v1028 = vadd.f32 %v334, %v1027
    %1029 = vmatprep.mubr.f32.mxu0 0.0
    %1030 = vmatmul.mubr.f32.gmra.mrb[0].mxu0 %v390
    %v1031 = vpop.f32.mrb[0].mxu0
    %v1032 = vadd.f32 %v330, %v1031
    %v1033 = vpop.f32.mrb[0].mxu0
    %v1034 = vadd.f32 %v334, %v1033
    %1035 = vdwg.mxu0
    %1036 = vst [vmem:[#allocation5] sm:$0xff] %v459
    %1037 = vst [vmem:[#allocation5 + $0x8] sm:$0xff] %v461
    %1038 = vst [vmem:[#allocation5 + $0x10] sm:$0xff] %v620
    %1039 = vst [vmem:[#allocation5 + $0x18] sm:$0xff] %v622
    %1040 = vst [vmem:[#allocation5 + $0x20] sm:$0xff] %v781
    %1041 = vst [vmem:[#allocation5 + $0x28] sm:$0xff] %v783
    %1042 = vst [vmem:[#allocation5 + $0x30] sm:$0xff] %v942
    %1043 = vst [vmem:[#allocation5 + $0x38] sm:$0xff] %v944
    %1044 = vst [vmem:[#allocation5 + $0x40] sm:$0xff] %v465
    %1045 = vst [vmem:[#allocation5 + $0x48] sm:$0xff] %v467
    %1046 = vst [vmem:[#allocation5 + $0x50] sm:$0xff] %v626
    %1047 = vst [vmem:[#allocation5 + $0x58] sm:$0xff] %v628
    %1048 = vst [vmem:[#allocation5 + $0x60] sm:$0xff] %v787
    %1049 = vst [vmem:[#allocation5 + $0x68] sm:$0xff] %v789
    %1050 = vst [vmem:[#allocation5 + $0x70] sm:$0xff] %v948
    %1051 = vst [vmem:[#allocation5 + $0x78] sm:$0xff] %v950
    %1052 = vst [vmem:[#allocation5 + $0x80] sm:$0xff] %v471
    %1053 = vst [vmem:[#allocation5 + $0x88] sm:$0xff] %v473
    %1054 = vst [vmem:[#allocation5 + $0x90] sm:$0xff] %v632
    %1055 = vst [vmem:[#allocation5 + $0x98] sm:$0xff] %v634
    %1056 = vst [vmem:[#allocation5 + $0xa0] sm:$0xff] %v793
    %1057 = vst [vmem:[#allocation5 + $0xa8] sm:$0xff] %v795
    %1058 = vst [vmem:[#allocation5 + $0xb0] sm:$0xff] %v954
    %1059 = vst [vmem:[#allocation5 + $0xb8] sm:$0xff] %v956
    %1060 = vst [vmem:[#allocation5 + $0xc0] sm:$0xff] %v477
    %1061 = vst [vmem:[#allocation5 + $0xc8] sm:$0xff] %v479
    %1062 = vst [vmem:[#allocation5 + $0xd0] sm:$0xff] %v638
    %1063 = vst [vmem:[#allocation5 + $0xd8] sm:$0xff] %v640
    %1064 = vst [vmem:[#allocation5 + $0xe0] sm:$0xff] %v799
    %1065 = vst [vmem:[#allocation5 + $0xe8] sm:$0xff] %v801
    %1066 = vst [vmem:[#allocation5 + $0xf0] sm:$0xff] %v960
    %1067 = vst [vmem:[#allocation5 + $0xf8] sm:$0xff] %v962
    %1068 = vst [vmem:[#allocation5 + $0x100] sm:$0xff] %v483
    %1069 = vst [vmem:[#allocation5 + $0x108] sm:$0xff] %v485
    %1070 = vst [vmem:[#allocation5 + $0x110] sm:$0xff] %v644
    %1071 = vst [vmem:[#allocation5 + $0x118] sm:$0xff] %v646
    %1072 = vst [vmem:[#allocation5 + $0x120] sm:$0xff] %v805
    %1073 = vst [vmem:[#allocation5 + $0x128] sm:$0xff] %v807
    %1074 = vst [vmem:[#allocation5 + $0x130] sm:$0xff] %v966
    %1075 = vst [vmem:[#allocation5 + $0x138] sm:$0xff] %v968
    %1076 = vst [vmem:[#allocation5 + $0x140] sm:$0xff] %v489
    %1077 = vst [vmem:[#allocation5 + $0x148] sm:$0xff] %v491
    %1078 = vst [vmem:[#allocation5 + $0x150] sm:$0xff] %v650
    %1079 = vst [vmem:[#allocation5 + $0x158] sm:$0xff] %v652
    %1080 = vst [vmem:[#allocation5 + $0x160] sm:$0xff] %v811
    %1081 = vst [vmem:[#allocation5 + $0x168] sm:$0xff] %v813
    %1082 = vst [vmem:[#allocation5 + $0x170] sm:$0xff] %v972
    %1083 = vst [vmem:[#allocation5 + $0x178] sm:$0xff] %v974
    %1084 = vst [vmem:[#allocation5 + $0x180] sm:$0xff] %v495
    %1085 = vst [vmem:[#allocation5 + $0x188] sm:$0xff] %v497
    %1086 = vst [vmem:[#allocation5 + $0x190] sm:$0xff] %v656
    %1087 = vst [vmem:[#allocation5 + $0x198] sm:$0xff] %v658
    %1088 = vst [vmem:[#allocation5 + $0x1a0] sm:$0xff] %v817
    %1089 = vst [vmem:[#allocation5 + $0x1a8] sm:$0xff] %v819
    %1090 = vst [vmem:[#allocation5 + $0x1b0] sm:$0xff] %v978
    %1091 = vst [vmem:[#allocation5 + $0x1b8] sm:$0xff] %v980
    %1092 = vst [vmem:[#allocation5 + $0x1c0] sm:$0xff] %v501
    %1093 = vst [vmem:[#allocation5 + $0x1c8] sm:$0xff] %v503
    %1094 = vst [vmem:[#allocation5 + $0x1d0] sm:$0xff] %v662
    %1095 = vst [vmem:[#allocation5 + $0x1d8] sm:$0xff] %v664
    %1096 = vst [vmem:[#allocation5 + $0x1e0] sm:$0xff] %v823
    %1097 = vst [vmem:[#allocation5 + $0x1e8] sm:$0xff] %v825
    %1098 = vst [vmem:[#allocation5 + $0x1f0] sm:$0xff] %v984
    %1099 = vst [vmem:[#allocation5 + $0x1f8] sm:$0xff] %v986
    %1100 = vst [vmem:[#allocation5 + $0x200] sm:$0xff] %v507
    %1101 = vst [vmem:[#allocation5 + $0x208] sm:$0xff] %v509
    %1102 = vst [vmem:[#allocation5 + $0x210] sm:$0xff] %v668
    %1103 = vst [vmem:[#allocation5 + $0x218] sm:$0xff] %v670
    %1104 = vst [vmem:[#allocation5 + $0x220] sm:$0xff] %v829
    %1105 = vst [vmem:[#allocation5 + $0x228] sm:$0xff] %v831
    %1106 = vst [vmem:[#allocation5 + $0x230] sm:$0xff] %v990
    %1107 = vst [vmem:[#allocation5 + $0x238] sm:$0xff] %v992
    %1108 = vst [vmem:[#allocation5 + $0x240] sm:$0xff] %v513
    %1109 = vst [vmem:[#allocation5 + $0x248] sm:$0xff] %v515
    %1110 = vst [vmem:[#allocation5 + $0x250] sm:$0xff] %v674
    %1111 = vst [vmem:[#allocation5 + $0x258] sm:$0xff] %v676
    %1112 = vst [vmem:[#allocation5 + $0x260] sm:$0xff] %v835
    %1113 = vst [vmem:[#allocation5 + $0x268] sm:$0xff] %v837
    %1114 = vst [vmem:[#allocation5 + $0x270] sm:$0xff] %v996
    %1115 = vst [vmem:[#allocation5 + $0x278] sm:$0xff] %v998
    %1116 = vst [vmem:[#allocation5 + $0x280] sm:$0xff] %v519
    %1117 = vst [vmem:[#allocation5 + $0x288] sm:$0xff] %v521
    %1118 = vst [vmem:[#allocation5 + $0x290] sm:$0xff] %v680
    %1119 = vst [vmem:[#allocation5 + $0x298] sm:$0xff] %v682
    %1120 = vst [vmem:[#allocation5 + $0x2a0] sm:$0xff] %v841
    %1121 = vst [vmem:[#allocation5 + $0x2a8] sm:$0xff] %v843
    %1122 = vst [vmem:[#allocation5 + $0x2b0] sm:$0xff] %v1002
    %1123 = vst [vmem:[#allocation5 + $0x2b8] sm:$0xff] %v1004
    %1124 = vst [vmem:[#allocation5 + $0x2c0] sm:$0xff] %v525
    %1125 = vst [vmem:[#allocation5 + $0x2c8] sm:$0xff] %v527
    %1126 = vst [vmem:[#allocation5 + $0x2d0] sm:$0xff] %v686
    %1127 = vst [vmem:[#allocation5 + $0x2d8] sm:$0xff] %v688
    %1128 = vst [vmem:[#allocation5 + $0x2e0] sm:$0xff] %v847
    %1129 = vst [vmem:[#allocation5 + $0x2e8] sm:$0xff] %v849
    %1130 = vst [vmem:[#allocation5 + $0x2f0] sm:$0xff] %v1008
    %1131 = vst [vmem:[#allocation5 + $0x2f8] sm:$0xff] %v1010
    %1132 = vst [vmem:[#allocation5 + $0x300] sm:$0xff] %v531
    %1133 = vst [vmem:[#allocation5 + $0x308] sm:$0xff] %v533
    %1134 = vst [vmem:[#allocation5 + $0x310] sm:$0xff] %v692
    %1135 = vst [vmem:[#allocation5 + $0x318] sm:$0xff] %v694
    %1136 = vst [vmem:[#allocation5 + $0x320] sm:$0xff] %v853
    %1137 = vst [vmem:[#allocation5 + $0x328] sm:$0xff] %v855
    %1138 = vst [vmem:[#allocation5 + $0x330] sm:$0xff] %v1014
    %1139 = vst [vmem:[#allocation5 + $0x338] sm:$0xff] %v1016
    %1140 = vst [vmem:[#allocation5 + $0x340] sm:$0xff] %v537
    %1141 = vst [vmem:[#allocation5 + $0x348] sm:$0xff] %v539
    %1142 = vst [vmem:[#allocation5 + $0x350] sm:$0xff] %v698
    %1143 = vst [vmem:[#allocation5 + $0x358] sm:$0xff] %v700
    %1144 = vst [vmem:[#allocation5 + $0x360] sm:$0xff] %v859
    %1145 = vst [vmem:[#allocation5 + $0x368] sm:$0xff] %v861
    %1146 = vst [vmem:[#allocation5 + $0x370] sm:$0xff] %v1020
    %1147 = vst [vmem:[#allocation5 + $0x378] sm:$0xff] %v1022
    %1148 = vst [vmem:[#allocation5 + $0x380] sm:$0xff] %v543
    %1149 = vst [vmem:[#allocation5 + $0x388] sm:$0xff] %v545
    %1150 = vst [vmem:[#allocation5 + $0x390] sm:$0xff] %v704
    %1151 = vst [vmem:[#allocation5 + $0x398] sm:$0xff] %v706
    %1152 = vst [vmem:[#allocation5 + $0x3a0] sm:$0xff] %v865
    %1153 = vst [vmem:[#allocation5 + $0x3a8] sm:$0xff] %v867
    %1154 = vst [vmem:[#allocation5 + $0x3b0] sm:$0xff] %v1026
    %1155 = vst [vmem:[#allocation5 + $0x3b8] sm:$0xff] %v1028
    %1156 = vst [vmem:[#allocation5 + $0x3c0] sm:$0xff] %v549
    %1157 = vst [vmem:[#allocation5 + $0x3c8] sm:$0xff] %v551
    %1158 = vst [vmem:[#allocation5 + $0x3d0] sm:$0xff] %v710
    %1159 = vst [vmem:[#allocation5 + $0x3d8] sm:$0xff] %v712
    %1160 = vst [vmem:[#allocation5 + $0x3e0] sm:$0xff] %v871
    %1161 = vst [vmem:[#allocation5 + $0x3e8] sm:$0xff] %v873
    %1162 = vst [vmem:[#allocation5 + $0x3f0] sm:$0xff] %v1032
    %1163 = vst [vmem:[#allocation5 + $0x3f8] sm:$0xff] %v1034
    // Predicated region
    $region26: #{tpu_custom_call.1} parent=1 // pred_check
      _
    $region27: #{tpu_custom_call.1} parent=1 // pred_check_branch
      %1165 = sbr.rel (0) target = $region29
    $region28: #{tpu_custom_call.1} parent=1 // pred_region
      %s1167 = ssub.s32 16384, 16384
      %1168 = vsyncadd [#allocation4], %s1167
      %s1169 = sshll.u32 [#allocation5], 4
      %s1170 = int_to_ptr.vmem [resolvable:$true] %s1169
      %1175 = dma.vmem_to_hbm [thread:$0]  %s1170, 16384, %s5, [#allocation4], 1024, 1024, 64
    $region29: #{tpu_custom_call.1} parent=1 // pred_fallthru
      _
    // Predicated region
    $region30: #{tpu_custom_call.1} parent=1 // pred_check
      _
    $region31: #{tpu_custom_call.1} parent=1 // pred_check_branch
      %1177 = sbr.rel (0) target = $region33
    $region32: #{tpu_custom_call.1} parent=1 // pred_region
      %1178 = dma.done [#allocation4], 16384
    $region33: #{tpu_custom_call.1} parent=1 // pred_fallthru
      _
    %1179 = vsyncpa [#allocation3], 1
    %1180 = vsyncpa [#allocation4], 1

</llo_original>
